<compile_context>
chip_gen: v5e
topology: v5e:2x2
jax: 0.10.0
libtpu: 0.0.40
codegen_flags: <defaults>
</compile_context>

<pallas_src>
import jax
import jax.numpy as jnp
from jax.experimental import pallas as pl
from jax.experimental.pallas import tpu as pltpu


def _gdn_kernel(x_ref, gamma_ref, beta_ref, o_ref, *, inverse: bool):
    x = x_ref[...]                                       # (C, tile_hw)
    x2 = x * x
    # norm[o, n] = sum_c gamma[o, c] * x2[c, n]  (gamma_eff is symmetric,
    # so no transpose is needed anywhere).
    norm = jnp.dot(gamma_ref[...], x2, preferred_element_type=jnp.float32)
    norm = norm + beta_ref[...]                          # (C,1) broadcasts over lanes
    if inverse:
        o_ref[...] = (x * jnp.sqrt(norm)).astype(o_ref.dtype)
    else:
        # rsqrt on the EUP + a VPU multiply instead of sqrt + divide.
        o_ref[...] = (x * jax.lax.rsqrt(norm)).astype(o_ref.dtype)


def gdn_pallas(x_nchw, gamma_eff, beta_eff, *, inverse=False, tile_hw=2048):
    """x_nchw: (B, C, H, W) float32; gamma_eff: (C, C) symmetric; beta_eff: (C,)."""
    B, C, H, W = x_nchw.shape
    HW = H * W
    x = x_nchw.reshape(B, C, HW)                         # reshape is free (NCHW kept)

    # Tile the spatial (lane) axis: multiple of 128, no larger than the
    # (128-rounded) spatial extent, and sized so 2 in + 2 out double-buffers
    # of (C, tile) f32 stay well under the v5e 16 MiB / v7x 32 MiB scoped VMEM.
    hw_rounded = ((HW + 127) // 128) * 128
    max_tile_by_vmem = max(128, ((8 * 1024 * 1024) // (16 * C)) // 128 * 128)
    tile = max(128, min(tile_hw, hw_rounded, max_tile_by_vmem))

    pad = (-HW) % tile
    if pad:
        # Padded columns are zeros -> norm = sqrt(beta) > 0, output 0, sliced off.
        x = jnp.pad(x, ((0, 0), (0, 0), (0, pad)))
    HWp = HW + pad

    beta_2d = beta_eff.reshape(C, 1)

    cost = pl.CostEstimate(
        flops=2 * B * HWp * C * C + 3 * B * C * HWp,
        transcendentals=B * C * HWp,
        bytes_accessed=2 * B * C * HWp * 4 + C * C * 4 + C * 4,
    )

    out = pl.pallas_call(
        lambda xr, gr, br, orf: _gdn_kernel(xr, gr, br, orf, inverse=inverse),
        out_shape=jax.ShapeDtypeStruct((B, C, HWp), x.dtype),
        grid_spec=pltpu.PrefetchScalarGridSpec(
            num_scalar_prefetch=0,
            grid=(B, HWp // tile),
            in_specs=[
                pl.BlockSpec((None, C, tile), lambda b, i: (b, 0, i)),  # x tile (batch squeezed)
                pl.BlockSpec((C, C), lambda b, i: (0, 0)),              # gamma (resident)
                pl.BlockSpec((C, 1), lambda b, i: (0, 0)),              # beta  (resident)
            ],
            out_specs=pl.BlockSpec((None, C, tile), lambda b, i: (b, 0, i)),
        ),
        compiler_params=pltpu.CompilerParams(
            dimension_semantics=("parallel", "parallel")),
        cost_estimate=cost,
    )(x, gamma_eff, beta_2d)

    if pad:
        out = out[:, :, :HW]
    return out.reshape(B, C, H, W)


def make_gdn_params(num_channel=128, beta_min=1e-6, beta_init=0.1,
                    gamma_min=1e-6, gamma_init=0.1, min_boundary=2 ** (-5)):
    """Deterministic parameter init mirroring GDN.__init__."""
    reparam_offset = min_boundary ** 2
    beta_bound = (beta_min + reparam_offset) ** 0.5
    gamma_bound = (gamma_min + reparam_offset) ** 0.5
    beta = jnp.sqrt(jnp.ones((num_channel,), jnp.float32) * beta_init + reparam_offset)
    gamma = jnp.sqrt(jnp.eye(num_channel, dtype=jnp.float32) * gamma_init + reparam_offset)
    return dict(beta=beta, gamma=gamma, reparam_offset=reparam_offset,
                beta_bound=beta_bound, gamma_bound=gamma_bound)


def gdn_forward(x_nchw, params, *, inverse=False):
    """Full GDN forward: parameter reparameterization (tiny glue, plain JAX) +
    the hot path (square / 1x1-conv-as-matmul / rsqrt / multiply) in Pallas."""
    beta, gamma = params["beta"], params["gamma"]
    off = params["reparam_offset"]
    # SetMinBoundary forward == elementwise max with the bound.
    gamma_p = (gamma + gamma.T) / 2.0                    # symmetric by construction
    beta_eff = jnp.maximum(beta, params["beta_bound"]) ** 2 - off
    gamma_eff = jnp.maximum(gamma_p, params["gamma_bound"]) ** 2 - off
    # TODO(synk): SetMinBoundary's custom backward (gradient gating) has no
    # forward-pass effect; only forward semantics are implemented here.
    return gdn_pallas(x_nchw, gamma_eff, beta_eff, inverse=inverse)


def _gdn_reference(x, params, *, inverse=False):
    beta, gamma = params["beta"], params["gamma"]
    off = params["reparam_offset"]
    gamma_p = (gamma + gamma.T) / 2.0
    beta_eff = jnp.maximum(beta, params["beta_bound"]) ** 2 - off
    gamma_eff = jnp.maximum(gamma_p, params["gamma_bound"]) ** 2 - off
    norm = jnp.einsum("bchw,oc->bohw", x * x, gamma_eff) + beta_eff[None, :, None, None]
    norm = jnp.sqrt(norm)
    return x * norm if inverse else x / norm


if __name__ == "__main__":
    B, C, H, W = 2, 4, 16, 16
    key = jax.random.PRNGKey(0)
    x = jax.random.normal(key, (B, C, H, W), dtype=jnp.float32)

    params = make_gdn_params(num_channel=C)

    out = gdn_forward(x, params, inverse=False)
    out = jax.block_until_ready(out)

    ref = _gdn_reference(x, params, inverse=False)
    assert out.shape == (B, C, H, W)
    assert jnp.allclose(out, ref, atol=1e-5, rtol=1e-5)

    # Also sanity-check the inverse (IGDN) path.
    out_inv = jax.block_until_ready(gdn_forward(x, params, inverse=True))
    ref_inv = _gdn_reference(x, params, inverse=True)
    assert jnp.allclose(out_inv, ref_inv, atol=1e-5, rtol=1e-5)

    print("KERNEL_OK")
</pallas_src>

<mosaic_0001>
module attributes {stable_mosaic.version = 11 : i64} {
  func.func @_lambda_(%arg0: i32, %arg1: i32, %arg2: memref<1x4x256xf32, #tpu.memory_space<vmem>>, %arg3: memref<4x4xf32, #tpu.memory_space<vmem>>, %arg4: memref<4x1xf32, #tpu.memory_space<vmem>>, %arg5: memref<1x4x256xf32, #tpu.memory_space<vmem>>) attributes {dimension_semantics = [#tpu.dimension_semantics<parallel>, #tpu.dimension_semantics<parallel>], iteration_bounds = array<i64: 2, 1>, scalar_prefetch = 0 : i64, scratch_operands = 0 : i64, tpu.core_type = #tpu.core_type<tc>, window_params = [{transform_indices = @transform_0, window_bounds = array<i64: 1, 4, 256>}, {pipeline_mode = #tpu.pipeline_mode<synchronous>, transform_indices = @transform_1, window_bounds = array<i64: 4, 4>}, {pipeline_mode = #tpu.pipeline_mode<synchronous>, transform_indices = @transform_2, window_bounds = array<i64: 4, 1>}, {transform_indices = @transform_3, window_bounds = array<i64: 1, 4, 256>}]} {
    %c0 = arith.constant 0 : index
    %c0_0 = arith.constant 0 : index
    %c0_1 = arith.constant 0 : index
    %0 = vector.load %arg2[%c0, %c0_0, %c0_1] : memref<1x4x256xf32, #tpu.memory_space<vmem>>, vector<1x4x256xf32>
    %1 = vector.shape_cast %0 : vector<1x4x256xf32> to vector<4x256xf32>
    %2 = arith.mulf %1, %1 : vector<4x256xf32>
    %c0_2 = arith.constant 0 : index
    %c0_3 = arith.constant 0 : index
    %3 = vector.load %arg3[%c0_2, %c0_3] : memref<4x4xf32, #tpu.memory_space<vmem>>, vector<4x4xf32>
    %cst = arith.constant dense<0.000000e+00> : vector<4x256xf32>
    %4 = tpu.matmul %3, %2, %cst {dimension_numbers = #tpu.dot_dimension_numbers<[1], [0], [0], [1], [0, 0, 1, 1], [], []>} : vector<4x4xf32>, vector<4x256xf32>, vector<4x256xf32> -> vector<4x256xf32>
    %c0_4 = arith.constant 0 : index
    %c0_5 = arith.constant 0 : index
    %5 = vector.load %arg4[%c0_4, %c0_5] : memref<4x1xf32, #tpu.memory_space<vmem>>, vector<4x1xf32>
    %6 = vector.broadcast %5 : vector<4x1xf32> to vector<4x256xf32>
    %7 = arith.addf %4, %6 : vector<4x256xf32>
    %8 = math.rsqrt %7 : vector<4x256xf32>
    %9 = arith.mulf %1, %8 : vector<4x256xf32>
    %c0_6 = arith.constant 0 : index
    %c0_7 = arith.constant 0 : index
    %c0_8 = arith.constant 0 : index
    %10 = vector.load %arg5[%c0_6, %c0_7, %c0_8] : memref<1x4x256xf32, #tpu.memory_space<vmem>>, vector<1x4x256xf32>
    %11 = vector.shape_cast %10 : vector<1x4x256xf32> to vector<4x256xf32>
    %12 = vector.shape_cast %9 : vector<4x256xf32> to vector<1x4x256xf32>
    tpu.vector_store %arg5[%c0_6, %c0_7, %c0_8], %12 {strides = array<i32>} : memref<1x4x256xf32, #tpu.memory_space<vmem>>, vector<1x4x256xf32>,
    return
  }
  func.func @transform_0(%arg0: i32, %arg1: i32) -> (i32, i32, i32) {
    %c0_i32 = arith.constant 0 : i32
    %c0_i32_0 = arith.constant 0 : i32
    return %arg0, %c0_i32, %arg1 : i32, i32, i32
  }
  func.func @transform_1(%arg0: i32, %arg1: i32) -> (i32, i32) {
    %c0_i32 = arith.constant 0 : i32
    %c0_i32_0 = arith.constant 0 : i32
    %c0_i32_1 = arith.constant 0 : i32
    return %c0_i32, %c0_i32_0 : i32, i32
  }
  func.func @transform_2(%arg0: i32, %arg1: i32) -> (i32, i32) {
    %c0_i32 = arith.constant 0 : i32
    %c0_i32_0 = arith.constant 0 : i32
    %c0_i32_1 = arith.constant 0 : i32
    return %c0_i32, %c0_i32_0 : i32, i32
  }
  func.func @transform_3(%arg0: i32, %arg1: i32) -> (i32, i32, i32) {
    %c0_i32 = arith.constant 0 : i32
    %c0_i32_0 = arith.constant 0 : i32
    return %arg0, %c0_i32, %arg1 : i32, i32, i32
  }
}

</mosaic_0001>

<llo_original>
// kernel: tpu_custom_call.1
$region0: #{tpu_custom_call.1}
  #allocation0 [shape = 'u32[]', space=smem, size = 0x4, offset = 0x4, fixed_abs, tag = 'smem constant byte address 0x4 - core index']
  #allocation1 [shape = 'u32[72,128]{1,0:T(1,128)}', space=vmem, size = 0x9000, scoped, tag = 'internal scratch']
  %s0 = inlined_call_operand.hbm [shape: f32[2,4,256], index: 0, kind: input, shape index: {}]
  %s1 = inlined_call_operand.vmem [shape: f32[4,4], index: 1, kind: input, shape index: {}]
  %s2 = inlined_call_operand.vmem [shape: f32[4,1], index: 2, kind: input, shape index: {}]
  %s3 = inlined_call_operand.hbm [shape: f32[2,4,256], index: 3, kind: output, shape index: {}]
  %s4 = sld [smem:[#allocation0]]
  $region49: #{tpu_custom_call.1} parent=0
    _
  %s6 = ssub.s32 1, %s4
  %s7 = scalar_select 0, %s6, %s4
  $region1: #{tpu_custom_call.1} parent=0
    #allocation2 [shape = 'u8[8192]{0}', space=vmem, size = 0x2000, scoped, tag = 'input window, operand 0']
    #allocation3 [shape = 's32[2]{0}', space=sflag, size = 0x8, scoped, tag = 'scoped memory for tpu_custom_call.1']
    #allocation4 [shape = 's32[2]{0}', space=sflag, size = 0x8, scoped, tag = 'scoped memory for tpu_custom_call.1']
    #allocation5 [shape = 'u8[8192]{0}', space=vmem, size = 0x2000, scoped, tag = 'output window, operand 0']
    %8 = vsyncpa [#allocation3], 0
    %s9 = scalar_lea.sflag [#allocation3], 1
    %10 = vsyncpa %s9, 0
    %11 = vsyncpa [#allocation4], 0
    %s12 = scalar_lea.sflag [#allocation4], 1
    %13 = vsyncpa %s12, 0
    loop: start=0, step=1, limit=4
    $region2: #{tpu_custom_call.1} parent=1 // loop_pre_header
      _
    $region3: #{tpu_custom_call.1} parent=1 // loop_header
      %s15 = sphi 0, %s19
      %p16 = scmp.ge.s32.totalorder %s15, 4
      %s22 = sphi 0, %s34
      %s23 = sphi 0, %s30
      %s24 = sphi 0, %s22
      %s25 = sphi 0, %s23
      %s26 = sphi 0, %s24
      %s27 = sphi 0, %s25
      %s39 = sphi 0, %s41
      %s42 = sphi 0, %s39
      %s43 = sphi 0, %s42
      %s59 = sphi 0, %s43
      %s63 = sphi 0, %s63
      %s65 = sphi 0, %s63
      %s66 = sphi 0, %s65
      %s80 = sphi 0, %s66
      %s84 = sphi 0, %s84
      %s86 = sphi 0, %s84
      %s87 = sphi 0, %s86
      %s101 = sphi 0, %s87
      %s109 = sphi 0, %s111
      %s112 = sphi 0, %s109
      %s113 = sphi 0, %s112
      %s129 = sphi 0, %s113
    $region4: #{tpu_custom_call.1} parent=1 // loop_header_branch
      %18 = sbr.rel (%p16) target = $region8
    $region5: #{tpu_custom_call.1} parent=1 // loop_body
      %s20 = ssub.s32 %s15, 1
      %s21 = ssub.s32 %s15, 2
      %s28 = sadd.s32 1, %s23
      %p29 = scmp.ge.s32.totalorder %s28, 1
      %s30 = scalar_select %p29, 0, %s28
      %s31 = sadd.s32 1, %s22
      %s32 = scalar_select %p29, %s31, %s22
      %p33 = scmp.ge.s32.totalorder %s32, 2
      %s34 = scalar_select %p33, 0, %s32
      %s35 = ssub.s32 %s22, %s34
      %s36 = ssub.s32 %s23, %s30
      %s37 = sor.u32 %s35, %s36
      %p38 = scmp.eq.s32.totalorder %s37, 0
      %s40 = sadd.s32 %s39, 1
      %s41 = scalar_select %p38, %s39, %s40
      %p44 = pneg %p38
      %p45 = scmp.eq.s32.totalorder %s15, 1
      %p46 = por %p44, %p45
      %p47 = scmp.ne.s32.totalorder %s39, %s42
      %p48 = scmp.eq.s32.totalorder %s15, 0
      %p49 = por %p47, %p48
      %p50 = scmp.ne.s32.totalorder %s39, %s42
      %p51 = scmp.eq.s32.totalorder %s20, 1
      %p52 = por %p50, %p51
      %p53 = scmp.ne.s32.totalorder %s42, %s43
      %p54 = scmp.eq.s32.totalorder %s20, 0
      %p55 = por %p53, %p54
      %p56 = scmp.ne.s32.totalorder %s42, %s43
      %p57 = scmp.eq.s32.totalorder %s21, 1
      %p58 = por %p56, %p57
      %p60 = scmp.ne.s32.totalorder %s43, %s59
      %p61 = scmp.eq.s32.totalorder %s21, 0
      %p62 = por %p60, %p61
      %s64 = sadd.s32 %s63, 1
      %p67 = scmp.eq.s32.totalorder %s15, 1
      %p68 = scmp.ne.s32.totalorder %s63, %s65
      %p69 = scmp.eq.s32.totalorder %s15, 0
      %p70 = por %p68, %p69
      %p71 = scmp.ne.s32.totalorder %s63, %s65
      %p72 = scmp.eq.s32.totalorder %s20, 1
      %p73 = por %p71, %p72
      %p74 = scmp.ne.s32.totalorder %s65, %s66
      %p75 = scmp.eq.s32.totalorder %s20, 0
      %p76 = por %p74, %p75
      %p77 = scmp.ne.s32.totalorder %s65, %s66
      %p78 = scmp.eq.s32.totalorder %s21, 1
      %p79 = por %p77, %p78
      %p81 = scmp.ne.s32.totalorder %s66, %s80
      %p82 = scmp.eq.s32.totalorder %s21, 0
      %p83 = por %p81, %p82
      %s85 = sadd.s32 %s84, 1
      %p88 = scmp.eq.s32.totalorder %s15, 1
      %p89 = scmp.ne.s32.totalorder %s84, %s86
      %p90 = scmp.eq.s32.totalorder %s15, 0
      %p91 = por %p89, %p90
      %p92 = scmp.ne.s32.totalorder %s84, %s86
      %p93 = scmp.eq.s32.totalorder %s20, 1
      %p94 = por %p92, %p93
      %p95 = scmp.ne.s32.totalorder %s86, %s87
      %p96 = scmp.eq.s32.totalorder %s20, 0
      %p97 = por %p95, %p96
      %p98 = scmp.ne.s32.totalorder %s86, %s87
      %p99 = scmp.eq.s32.totalorder %s21, 1
      %p100 = por %p98, %p99
      %p102 = scmp.ne.s32.totalorder %s87, %s101
      %p103 = scmp.eq.s32.totalorder %s21, 0
      %p104 = por %p102, %p103
      %s105 = ssub.s32 %s22, %s34
      %s106 = ssub.s32 %s23, %s30
      %s107 = sor.u32 %s105, %s106
      %p108 = scmp.eq.s32.totalorder %s107, 0
      %s110 = sadd.s32 %s109, 1
      %s111 = scalar_select %p108, %s109, %s110
      %p114 = pneg %p108
      %p115 = scmp.eq.s32.totalorder %s15, 1
      %p116 = por %p114, %p115
      %p117 = scmp.ne.s32.totalorder %s109, %s112
      %p118 = scmp.eq.s32.totalorder %s15, 0
      %p119 = por %p117, %p118
      %p120 = scmp.ne.s32.totalorder %s109, %s112
      %p121 = scmp.eq.s32.totalorder %s20, 1
      %p122 = por %p120, %p121
      %p123 = scmp.ne.s32.totalorder %s112, %s113
      %p124 = scmp.eq.s32.totalorder %s20, 0
      %p125 = por %p123, %p124
      %p126 = scmp.ne.s32.totalorder %s112, %s113
      %p127 = scmp.eq.s32.totalorder %s21, 1
      %p128 = por %p126, %p127
      %p130 = scmp.ne.s32.totalorder %s113, %s129
      %p131 = scmp.eq.s32.totalorder %s21, 0
      %p132 = por %p130, %p131
      %p133 = scmp.le.s32.totalorder 1, %s15
      %p134 = scmp.lt.s32.totalorder %s15, 3
      %p135 = pnand %p133, %p134
      %p136 = pneg %p135
      // Predicated region
      $region9: #{tpu_custom_call.1} parent=5 // pred_check
        _
      $region10: #{tpu_custom_call.1} parent=5 // pred_check_branch
        %138 = sbr.rel (%p135) target = $region12
      $region11: #{tpu_custom_call.1} parent=5 // pred_region
        %s139 = ssub.s32 %s15, 1
        // Predicated region
        $region13: #{tpu_custom_call.1} parent=11 // pred_check
          %p140 = pneg %p76
        $region14: #{tpu_custom_call.1} parent=11 // pred_check_branch
          %142 = sbr.rel (%p140) target = $region16
        $region15: #{tpu_custom_call.1} parent=11 // pred_region
          _
        $region16: #{tpu_custom_call.1} parent=11 // pred_fallthru
          _
        // Predicated region
        $region17: #{tpu_custom_call.1} parent=11 // pred_check
          %p143 = pneg %p97
        $region18: #{tpu_custom_call.1} parent=11 // pred_check_branch
          %145 = sbr.rel (%p143) target = $region20
        $region19: #{tpu_custom_call.1} parent=11 // pred_region
          _
        $region20: #{tpu_custom_call.1} parent=11 // pred_fallthru
          _
      $region12: #{tpu_custom_call.1} parent=5 // pred_fallthru
        _
      %p146 = scmp.lt.s32.totalorder %s15, 2
      // Predicated region
      $region21: #{tpu_custom_call.1} parent=5 // pred_check
        %p147 = pneg %p146
      $region22: #{tpu_custom_call.1} parent=5 // pred_check_branch
        %149 = sbr.rel (%p147) target = $region24
      $region23: #{tpu_custom_call.1} parent=5 // pred_region
        // Predicated region
        $region25: #{tpu_custom_call.1} parent=23 // pred_check
          %p150 = pneg %p49
        $region26: #{tpu_custom_call.1} parent=23 // pred_check_branch
          %152 = sbr.rel (%p150) target = $region28
        $region27: #{tpu_custom_call.1} parent=23 // pred_region
          %s153 = sand.u32 %s39, 1
          %s154 = scalar_lea.sflag [#allocation3], %s153
          %s155 = sand.u32 %s39, 1
          %s156 = smul.addr %s155, 8
          %s157 = scalar_lea.vmem [#allocation2], %s156
          %s158 = smul.u32 2, %s23
          %160 = vsyncadd %s154, 0
          %s161 = smul.addr %s22, 2
          %s162 = sadd.s32 %s158, %s161
          %s163 = smul.addr %s162, 4
          %s164 = scalar_lea.hbm %s0, %s163
          %s166 = sshll.u32 %s164, 4
          %s167 = int_to_ptr.hbm [resolvable:$true] %s166
          %s168 = sshll.u32 %s157, 4
          %s169 = int_to_ptr.vmem [resolvable:$true] %s168
          %171 = dma.hbm_to_vmem [thread:$0]  %s167, 128, %s169, %s154
        $region28: #{tpu_custom_call.1} parent=23 // pred_fallthru
          _
      $region24: #{tpu_custom_call.1} parent=5 // pred_fallthru
        _
      %p172 = scmp.le.s32.totalorder 1, %s15
      %p173 = scmp.lt.s32.totalorder %s15, 3
      %p174 = pnand %p172, %p173
      %p175 = pneg %p174
      // Predicated region
      $region29: #{tpu_custom_call.1} parent=5 // pred_check
        _
      $region30: #{tpu_custom_call.1} parent=5 // pred_check_branch
        %177 = sbr.rel (%p174) target = $region32
      $region31: #{tpu_custom_call.1} parent=5 // pred_region
        %s178 = ssub.s32 %s15, 1
        %s179 = sand.u32 %s42, 1
        %s180 = scalar_lea.sflag [#allocation3], %s179
        %s181 = sand.u32 %s42, 1
        %s182 = smul.addr %s181, 8
        %s183 = scalar_lea.vmem [#allocation2], %s182
        // Predicated region
        $region33: #{tpu_custom_call.1} parent=31 // pred_check
          %p184 = pneg %p55
        $region34: #{tpu_custom_call.1} parent=31 // pred_check_branch
          %186 = sbr.rel (%p184) target = $region36
        $region35: #{tpu_custom_call.1} parent=31 // pred_region
          %188 = dma.done %s180, 128
        $region36: #{tpu_custom_call.1} parent=31 // pred_fallthru
          _
        %s189 = sand.u32 %s42, 1
        %s190 = scalar_lea.sflag [#allocation3], %s189
        %s191 = sand.u32 %s42, 1
        %s192 = smul.addr %s191, 8
        %s193 = scalar_lea.vmem [#allocation2], %s192
        %p194 = pneg %p55
        %p195 = pneg %p52
        %p196 = pneg %p76
        %p197 = pneg %p73
        %p198 = pneg %p97
        %p199 = pneg %p94
        %p200 = pneg %p125
        %p201 = pneg %p122
        %s202 = sand.u32 %s112, 1
        %s203 = scalar_lea.sflag [#allocation4], %s202
        %s204 = sand.u32 %s112, 1
        %s205 = smul.addr %s204, 8
        %s206 = scalar_lea.vmem [#allocation5], %s205
        %s207 = smul.u32 2, %s25
        %s208 = smul.u32 2, %s25
        %v209 = vld [vmem:[%s183] sm:$0xff]
        %v210 = vmul.f32 %v209, %v209
        %v211 = vld [vmem:[%s1] sm:$0xf]
        %v212 = vld [vmem:[%s2] sm:$0xf]
        %214 = vset.pattern.permute.xlu0 0
        %215 = vperm.xlu0 %214, %v212
        %v216 = vpop.permute.xlu0 %215
        %219 = vst [vmem:[#allocation1] ss:$2 sm:$0xff] %v210
        %v220 = vld.sshfl [vmem:[#allocation1] sm:$0xff pattern:$0x75316420]
        %v221 = vld.sshfl [vmem:[#allocation1 + $0x8] sm:$0xff pattern:$0x75316420]
        %vm222 = vcmask 31744
        %v224 = vsel %vm222, %v211, 0
        %vm226 = vcmask 1043456
        %v227 = vsel %vm226, %v220, 0
        %v229 = vsel %vm226, %v221, 0
        %231 = vmatpush.msra.mxu0 0.0
        %232 = vmatpush.msra.mxu0 0.0
        %233 = vmatpush.msra.mxu0 0.0
        %234 = vmatpush.msra.mxu0 0.0
        %235 = vmatpush.msra.mxu0 0.0
        %236 = vmatpush.msra.mxu0 0.0
        %237 = vmatpush.msra.mxu0 0.0
        %238 = vmatpush.msra.mxu0 0.0
        %239 = vmatpush.msra.mxu0 0.0
        %240 = vmatpush.msra.mxu0 0.0
        %241 = vmatpush.msra.mxu0 0.0
        %242 = vmatpush.msra.mxu0 0.0
        %243 = vmatpush.msra.mxu0 0.0
        %244 = vmatpush.msra.mxu0 0.0
        %245 = vmatpush.msra.mxu0 0.0
        %246 = vmatpush.msra.mxu0 %v227
        %247 = vmatmul.f32.gmra.mxu0 %v224
        %v248 = vpop.f32.mrf.mxu0
        %v249 = vadd.f32 %v216, %v248
        %250 = vdwg.mxu0
        %251 = vmatpush.msra.mxu0 0.0
        %252 = vmatpush.msra.mxu0 0.0
        %253 = vmatpush.msra.mxu0 0.0
        %254 = vmatpush.msra.mxu0 0.0
        %255 = vmatpush.msra.mxu0 0.0
        %256 = vmatpush.msra.mxu0 0.0
        %257 = vmatpush.msra.mxu0 0.0
        %258 = vmatpush.msra.mxu0 0.0
        %259 = vmatpush.msra.mxu0 0.0
        %260 = vmatpush.msra.mxu0 0.0
        %261 = vmatpush.msra.mxu0 0.0
        %262 = vmatpush.msra.mxu0 0.0
        %263 = vmatpush.msra.mxu0 0.0
        %264 = vmatpush.msra.mxu0 0.0
        %265 = vmatpush.msra.mxu0 0.0
        %266 = vmatpush.msra.mxu0 %v229
        %267 = vmatmul.f32.gmra.mxu0 %v224
        %v268 = vpop.f32.mrf.mxu0
        %v269 = vadd.f32 %v216, %v268
        %270 = vdwg.mxu0
        %v271 = vrsqrt.pop %v249
        %v272 = vmul.f32 %v271, %v249
        %v273 = vmul.f32 %v272, %v271
        %v274 = vmul.f32 0.5, %v273
        %v275 = vsub.f32 1.5, %v274
        %v276 = vmul.f32 %v271, %v275
        %vm277 = vweird.f32 %v249
        %vm278 = vweird.f32 %v271
        %vm279 = vmor %vm277, %vm278
        %v280 = vsel %vm279, %v271, %v276
        %v281 = vrsqrt.pop %v269
        %v282 = vmul.f32 %v281, %v269
        %v283 = vmul.f32 %v282, %v281
        %v284 = vmul.f32 0.5, %v283
        %v285 = vsub.f32 1.5, %v284
        %v286 = vmul.f32 %v281, %v285
        %vm287 = vweird.f32 %v269
        %vm288 = vweird.f32 %v281
        %vm289 = vmor %vm287, %vm288
        %v290 = vsel %vm289, %v281, %v286
        %v293 = vrot.slane %v290, 4
        %v294 = vsel %vm226, %v280, %v293
        %v296 = vmul.f32 %v209, %v294
        %297 = vst [vmem:[%s206] sm:$0xff] %v296
        %s298 = sand.u32 %s112, 1
        %s299 = scalar_lea.sflag [#allocation4], %s298
        %s300 = sand.u32 %s112, 1
        %s301 = smul.addr %s300, 8
        %s302 = scalar_lea.vmem [#allocation5], %s301
        // Predicated region
        $region37: #{tpu_custom_call.1} parent=31 // pred_check
          %p303 = pneg %p122
        $region38: #{tpu_custom_call.1} parent=31 // pred_check_branch
          %305 = sbr.rel (%p303) target = $region40
        $region39: #{tpu_custom_call.1} parent=31 // pred_region
          %s306 = smul.u32 2, %s25
          %308 = vsyncadd %s299, 0
          %s309 = smul.addr %s24, 2
          %s310 = sadd.s32 %s306, %s309
          %s311 = smul.addr %s310, 4
          %s312 = scalar_lea.hbm %s3, %s311
          %s314 = sshll.u32 %s302, 4
          %s315 = int_to_ptr.vmem [resolvable:$true] %s314
          %s316 = sshll.u32 %s312, 4
          %s317 = int_to_ptr.hbm [resolvable:$true] %s316
          %319 = dma.vmem_to_hbm [thread:$0]  %s315, 128, %s317, %s299
        $region40: #{tpu_custom_call.1} parent=31 // pred_fallthru
          _
      $region32: #{tpu_custom_call.1} parent=5 // pred_fallthru
        _
      %p320 = scmp.le.s32.totalorder 2, %s15
      // Predicated region
      $region41: #{tpu_custom_call.1} parent=5 // pred_check
        %p321 = pneg %p320
      $region42: #{tpu_custom_call.1} parent=5 // pred_check_branch
        %323 = sbr.rel (%p321) target = $region44
      $region43: #{tpu_custom_call.1} parent=5 // pred_region
        %s324 = ssub.s32 %s15, 2
        // Predicated region
        $region45: #{tpu_custom_call.1} parent=43 // pred_check
          %p325 = pneg %p128
        $region46: #{tpu_custom_call.1} parent=43 // pred_check_branch
          %327 = sbr.rel (%p325) target = $region48
        $region47: #{tpu_custom_call.1} parent=43 // pred_region
          %s328 = sand.u32 %s113, 1
          %s329 = scalar_lea.sflag [#allocation4], %s328
          %s330 = sand.u32 %s113, 1
          %s331 = smul.addr %s330, 8
          %s332 = scalar_lea.vmem [#allocation5], %s331
          %334 = dma.done %s329, 128
        $region48: #{tpu_custom_call.1} parent=43 // pred_fallthru
          _
      $region44: #{tpu_custom_call.1} parent=5 // pred_fallthru
        _
    $region6: #{tpu_custom_call.1} parent=1 // loop_footer
      %s19 = sadd.s32 1, %s15
    $region7: #{tpu_custom_call.1} parent=1 // loop_footer_branch
      %14 = sbr.rel target = $region3
    $region8: #{tpu_custom_call.1} parent=1 // loop_exit
      _
    %335 = vsyncpa [#allocation3], 1
    %s336 = scalar_lea.sflag [#allocation3], 1
    %337 = vsyncpa %s336, 1
    %338 = vsyncpa [#allocation4], 1
    %s339 = scalar_lea.sflag [#allocation4], 1
    %340 = vsyncpa %s339, 1

</llo_original>
